<compile_context>
chip_gen: v7x
topology: tpu7x:2x2x1
jax: 0.10.0
libtpu: 0.0.40
codegen_flags: <defaults>
</compile_context>

<pallas_src>
import functools

import jax
import jax.numpy as jnp
from jax import lax
from jax.experimental import pallas as pl
from jax.experimental.pallas import tpu as pltpu


# ----------------------------- option checking (mirrors the PyTorch module) ----------------

def make_tuple(value, n_value):
    if not isinstance(value, (list, tuple)):
        return (value,) * n_value
    n_item = len(value)
    if n_item > n_value:
        raise ValueError(f"Number items does not match with requirements: {n_item}, expected: {n_value}")
    if n_item == n_value:
        return tuple(value)
    return tuple(value) * n_value


def check_options(in_channels, out_channels, dilation, groups, bias, padding_mode="zeros"):
    dilation = make_tuple(dilation, 2)
    if dilation[0] > 1 or dilation[1] > 1:
        raise ValueError("DepthwiseConv2d does not support dilations > 1")
    if groups is not None and groups != in_channels:
        raise ValueError("DepthwiseConv2d does not support groups != in_channels")
    if in_channels != out_channels:
        raise ValueError("DepthwiseConv2d does not support in_channels != out_channels")
    if bias:
        raise ValueError("DepthwiseConv2d does not support bias")
    if padding_mode != "zeros":
        raise ValueError("DepthwiseConv2d does not non-zero paddings")


# ----------------------------- small static helpers ----------------------------------------

def _cdiv(a, b):
    return -(-a // b)


def _largest_divisor_leq(n, x):
    x = max(1, min(n, int(x)))
    while n % x:
        x -= 1
    return x


def _vmem_budget_and_cap():
    """Generation-aware VMEM budget (bytes) for the pipelined blocks + total capacity."""
    try:
        cap = int(pltpu.get_tpu_info().vmem_capacity_bytes)
    except Exception:
        cap = 64 * 1024 * 1024          # v7x per-TensorCore capacity: safe lower bound
    budget = min(max(cap // 3, 8 * 1024 * 1024), 28 * 1024 * 1024)
    return budget, cap


def _make_strips(h_out, base=8, max_strips=32):
    """Static (row_start, rows) strips covering the output rows."""
    rs = base
    if _cdiv(h_out, rs) > max_strips:
        rs = _cdiv(_cdiv(h_out, max_strips), base) * base
    strips, r = [], 0
    while r < h_out:
        strips.append((r, min(rs, h_out - r)))
        r += rs
    return tuple(strips)


# ----------------------------- stride==1 fast-path kernel ----------------------------------

def _dwconv2d_s1_kernel(x_ref, w_ref, o_ref, *, kh_size, kw_size, w_out,
                        ph, pw, h_in, w_in, strips, chunk_c):
    """Stride-1 depthwise conv on one (channel-tile, batch) block (NCHW, W on lanes).

    x_ref: (TILE_C, H, W)          unpadded input block
    w_ref: (TILE_C, KH, KW)        depthwise filters
    o_ref: (TILE_C, H_out, W_out)  output block
    Zero padding is applied per row strip in registers (no VMEM scratch, no extra copy).
    """
    tile_c = o_ref.shape[0]
    n_chunks = tile_c // chunk_c

    def process_chunk(c0):
        # Weights for this channel chunk, promoted to f32 once per chunk.
        wv = w_ref[pl.ds(c0, chunk_c), :, :].astype(jnp.float32)          # (cc, KH, KW)

        for r0, rs in strips:                                             # static row strips
            rows_total = rs + kh_size - 1
            lo = r0 - ph                                                  # first input row
            hi = r0 + rs + kh_size - 1 - ph                               # one past last
            lo_c, hi_c = max(lo, 0), min(hi, h_in)

            if hi_c <= lo_c:                       # strip entirely in the zero halo
                slab = jnp.zeros((chunk_c, rows_total, w_in), jnp.float32)
            else:
                # Load the needed input rows once, promote to f32 once per strip.
                slab = x_ref[pl.ds(c0, chunk_c), lo_c:hi_c, :].astype(jnp.float32)
                parts = []
                if lo_c - lo:
                    parts.append(jnp.zeros((chunk_c, lo_c - lo, w_in), jnp.float32))
                parts.append(slab)
                if hi - hi_c:
                    parts.append(jnp.zeros((chunk_c, hi - hi_c, w_in), jnp.float32))
                if len(parts) > 1:
                    slab = jnp.concatenate(parts, axis=1)
            if pw:
                zcol = jnp.zeros((chunk_c, rows_total, pw), jnp.float32)
                slab = jnp.concatenate([zcol, slab, zcol], axis=2)
            # slab: (cc, rs + KH - 1, W + 2*pw), zero halo included, f32.

            acc = None
            for j in range(kw_size):                    # kw outer: one lane shift per j
                shifted = slab[:, :, j:j + w_out]       # (cc, rs+KH-1, W_out)
                for i in range(kh_size):                # sublane offsets are cheap
                    patch = shifted[:, i:i + rs, :]     # (cc, rs, W_out)
                    tap = wv[:, i:i + 1, j:j + 1]       # (cc, 1, 1)
                    contrib = patch * tap
                    acc = contrib if acc is None else acc + contrib
            # One store per strip; accumulator stayed in registers across all taps.
            o_ref[pl.ds(c0, chunk_c), r0:r0 + rs, :] = acc.astype(o_ref.dtype)

    if n_chunks == 1:
        process_chunk(0)
    else:
        def body(ic, carry):
            process_chunk(pl.multiple_of(ic * chunk_c, chunk_c))
            return carry
        lax.fori_loop(0, n_chunks, body, 0, unroll=False)


# ----------------------------- stride>1 fallback kernel ------------------------------------

def _dwconv2d_strided_kernel(x_ref, w_ref, o_ref, *scratch, kh_size, kw_size, h_out, w_out,
                             sh, sw, ph, pw, h_in, w_in, padded):
    """Per-tap fallback for stride > 1 (padded VMEM scratch, strided ref reads)."""
    tile_c = o_ref.shape[0]
    if padded:
        xpad_ref = scratch[0]
        h_pad = h_in + 2 * ph
        w_pad = w_in + 2 * pw
        zdt = xpad_ref.dtype
        if ph > 0:
            xpad_ref[:, 0:ph, :] = jnp.zeros((tile_c, ph, w_pad), zdt)
            xpad_ref[:, ph + h_in:h_pad, :] = jnp.zeros((tile_c, ph, w_pad), zdt)
        if pw > 0:
            xpad_ref[:, :, 0:pw] = jnp.zeros((tile_c, h_pad, pw), zdt)
            xpad_ref[:, :, pw + w_in:w_pad] = jnp.zeros((tile_c, h_pad, pw), zdt)
        # TODO(synk): DMA the HBM block straight into this scratch interior
        # (memory_space=pl.ANY + pltpu.make_async_copy) to remove this VMEM->VMEM pass.
        xpad_ref[:, ph:ph + h_in, pw:pw + w_in] = x_ref[...]
        src = xpad_ref
    else:
        src = x_ref

    acc = None
    for kh in range(kh_size):
        row = pl.ds(kh, h_out, sh) if sh > 1 else pl.ds(kh, h_out)
        for kw in range(kw_size):
            # TODO(synk): phase-decompose W for stride > 1 instead of lane-strided reads.
            col = pl.ds(kw, w_out, sw) if sw > 1 else pl.ds(kw, w_out)
            patch = src[:, row, col].astype(jnp.float32)
            tap = w_ref[:, kh:kh + 1, kw:kw + 1].astype(jnp.float32)
            contrib = patch * tap
            acc = contrib if acc is None else acc + contrib
    o_ref[...] = acc.astype(o_ref.dtype)


# ----------------------------- wrapper ------------------------------------------------------

def depthwise_conv2d_pallas(x, weight, stride=1, padding=0, dilation=1, groups=None,
                            bias=None, *, chunk_channels=None, min_grid_steps=4):
    """Depthwise conv2d matching F.conv2d(x, w, stride, padding, groups=C) with w: (C,1,K,K)."""
    n, c, h, w = x.shape
    c_out, one, kh_size, kw_size = weight.shape
    assert one == 1
    check_options(c, c_out, dilation, groups, bias is not None, padding_mode="zeros")

    sh, sw = make_tuple(stride, 2)
    ph, pw = make_tuple(padding, 2)

    h_out = (h + 2 * ph - kh_size) // sh + 1
    w_out = (w + 2 * pw - kw_size) // sw + 1
    assert h_out > 0 and w_out > 0, "empty output"
    padded = (ph > 0) or (pw > 0)
    h_pad, w_pad = h + 2 * ph, w + 2 * pw
    use_s1 = (sh == 1 and sw == 1)

    isz = jnp.dtype(x.dtype).itemsize
    wsz = jnp.dtype(weight.dtype).itemsize

    budget, vmem_cap = _vmem_budget_and_cap()
    # Per-channel VMEM: double-buffered input + output blocks, (8,128)-padded weight tile,
    # and (strided fallback only) the padded scratch + f32 temporaries.
    per_c = 2 * h * w * isz + 2 * h_out * w_out * isz + 2 * 8 * 128 * wsz
    if not use_s1:
        per_c += h_pad * w_pad * isz + 3 * h_out * w_out * 4
    budget_eff = max(budget - 2 * 1024 * 1024, per_c)    # fixed reserve for compiler temps
    tile_c = _largest_divisor_leq(c, budget_eff // per_c)
    # Keep >= min_grid_steps grid steps: feeds both v7x TensorCores and the DMA pipeline.
    while tile_c > 1 and (c // tile_c) * n < min_grid_steps:
        tile_c = _largest_divisor_leq(c, tile_c - 1)

    # (C, 1, K, K) -> (C, K, K): pure reshape, no HBM transpose pass.
    w_ckk = weight.reshape(c_out, kh_size, kw_size)

    grid = (c // tile_c, n)          # channel axis slow -> weight block re-fetched rarely
    x_spec = pl.BlockSpec((None, tile_c, h, w), lambda ci, ni: (ni, ci, 0, 0))
    w_spec = pl.BlockSpec((tile_c, kh_size, kw_size), lambda ci, ni: (ci, 0, 0))
    o_spec = pl.BlockSpec((None, tile_c, h_out, w_out), lambda ci, ni: (ni, ci, 0, 0))

    est_bytes = tile_c * per_c + 4 * 1024 * 1024
    vmem_limit = int(min(vmem_cap * 0.9, max(48 * 1024 * 1024, 2 * est_bytes)))
    params = pltpu.CompilerParams(dimension_semantics=("parallel", "parallel"),
                                  vmem_limit_bytes=vmem_limit)

    if use_s1:
        strips = _make_strips(h_out)
        # Channel-chunk size: keep slab + shifted slab + f32 accumulator ~vreg-resident.
        rs_max = max(s for _, s in strips)
        rows = rs_max + kh_size - 1
        per_chan_elems = rows * (w + 2 * pw) + rows * w_out + rs_max * w_out
        cc = chunk_channels if chunk_channels is not None else max(1, 16384 // max(per_chan_elems, 1))
        cc = _largest_divisor_leq(tile_c, cc)
        kernel = functools.partial(
            _dwconv2d_s1_kernel, kh_size=kh_size, kw_size=kw_size, w_out=w_out,
            ph=ph, pw=pw, h_in=h, w_in=w, strips=strips, chunk_c=cc)
        scratch_shapes = []
    else:
        kernel = functools.partial(
            _dwconv2d_strided_kernel, kh_size=kh_size, kw_size=kw_size,
            h_out=h_out, w_out=w_out, sh=sh, sw=sw, ph=ph, pw=pw,
            h_in=h, w_in=w, padded=padded)
        scratch_shapes = [pltpu.VMEM((tile_c, h_pad, w_pad), x.dtype)] if padded else []

    return pl.pallas_call(
        kernel,
        out_shape=jax.ShapeDtypeStruct((n, c, h_out, w_out), x.dtype),
        grid=grid,
        in_specs=[x_spec, w_spec],
        out_specs=o_spec,
        scratch_shapes=scratch_shapes,
        compiler_params=params,
    )(x, w_ckk)


# ----------------------------- Module-style wrapper -----------------------------------------

class DepthwiseConv2d:
    """JAX/Pallas port of torch_dwconv.DepthwiseConv2d (forward only, bias-free)."""

    def __init__(self, in_channels, out_channels, kernel_size, stride=1, padding=0,
                 dilation=1, groups=None, bias=False, padding_mode="zeros", custom=True,
                 *, key):
        check_options(in_channels, out_channels, dilation, groups, bias, padding_mode)
        self.stride = stride
        self.padding = padding
        self.in_channel = in_channels
        self.kernel_size = kernel_size
        # nn.Parameter(torch.randn(out_channels, 1, k, k)) -> deterministic normal init here.
        self.weight = jax.random.normal(key, (out_channels, 1, kernel_size, kernel_size), jnp.float32)
        self.custom = custom

    def __call__(self, x):
        return depthwise_conv2d_pallas(x, self.weight, stride=self.stride, padding=self.padding)


# ----------------------------- main ----------------------------------------------------------

if __name__ == "__main__":
    key = jax.random.PRNGKey(0)
    k_x, k_w, k_x2, k_w2 = jax.random.split(key, 4)

    def ref_conv(xv, wv, stride, padding, groups):
        s = make_tuple(stride, 2)
        p = make_tuple(padding, 2)
        return jax.lax.conv_general_dilated(
            xv, wv, window_strides=s, padding=[(p[0], p[0]), (p[1], p[1])],
            dimension_numbers=("NCHW", "OIHW", "NCHW"), feature_group_count=groups,
            precision=jax.lax.Precision.HIGHEST)

    # 1) padding=1, stride=1 -> zero halo applied per row strip in registers (no scratch).
    N, C, H, W, K = 2, 4, 16, 16, 3
    x = jax.random.normal(k_x, (N, C, H, W), jnp.float32)
    module = DepthwiseConv2d(C, C, K, stride=1, padding=1, key=k_w)
    out = jax.block_until_ready(module(x))
    ref = ref_conv(x, module.weight, 1, 1, C)
    assert out.shape == (N, C, H, W)
    assert jnp.allclose(out, ref, atol=1e-4, rtol=1e-4), "mismatch vs XLA reference (padded, s=1)"

    # 2) padding=0, stride=1 -> unpadded path, ragged last row strip (h_out = 14).
    out0 = jax.block_until_ready(depthwise_conv2d_pallas(x, module.weight, stride=1, padding=0))
    ref0 = ref_conv(x, module.weight, 1, 0, C)
    assert out0.shape == (N, C, H - K + 1, W - K + 1)
    assert jnp.allclose(out0, ref0, atol=1e-4, rtol=1e-4), "mismatch vs XLA reference (unpadded, s=1)"

    # 3) K=5, padding=2, non-multiple-of-8 H, forced channel chunking (fori_loop chunk path).
    N2, C2, H2, W2, K2 = 2, 8, 20, 24, 5
    x2 = jax.random.normal(k_x2, (N2, C2, H2, W2), jnp.float32)
    w2 = jax.random.normal(k_w2, (C2, 1, K2, K2), jnp.float32)
    out2 = jax.block_until_ready(
        depthwise_conv2d_pallas(x2, w2, stride=1, padding=2, chunk_channels=2))
    ref2 = ref_conv(x2, w2, 1, 2, C2)
    assert out2.shape == (N2, C2, H2, W2)
    assert jnp.allclose(out2, ref2, atol=1e-4, rtol=1e-4), "mismatch vs XLA reference (K=5, chunked)"

    print("KERNEL_OK")
</pallas_src>

<mosaic_0001>
module attributes {stable_mosaic.version = 11 : i64} {
  func.func @_dwconv2d_s1_kernel(%arg0: i32, %arg1: i32, %arg2: memref<1x2x16x16xf32, #tpu.memory_space<vmem>>, %arg3: memref<2x3x3xf32, #tpu.memory_space<vmem>>, %arg4: memref<1x2x16x16xf32, #tpu.memory_space<vmem>>) attributes {dimension_semantics = [#tpu.dimension_semantics<parallel>, #tpu.dimension_semantics<parallel>], iteration_bounds = array<i64: 2, 2>, scalar_prefetch = 0 : i64, scratch_operands = 0 : i64, tpu.core_type = #tpu.core_type<tc>, window_params = [{transform_indices = @transform_0, window_bounds = array<i64: 1, 2, 16, 16>}, {transform_indices = @transform_1, window_bounds = array<i64: 2, 3, 3>}, {transform_indices = @transform_2, window_bounds = array<i64: 1, 2, 16, 16>}]} {
    %c0 = arith.constant 0 : index
    %c0_0 = arith.constant 0 : index
    %c0_1 = arith.constant 0 : index
    %0 = vector.load %arg3[%c0, %c0_0, %c0_1] : memref<2x3x3xf32, #tpu.memory_space<vmem>>, vector<2x3x3xf32>
    %c0_2 = arith.constant 0 : index
    %c0_3 = arith.constant 0 : index
    %c0_4 = arith.constant 0 : index
    %c0_5 = arith.constant 0 : index
    %1 = vector.load %arg2[%c0_2, %c0_3, %c0_4, %c0_5] : memref<1x2x16x16xf32, #tpu.memory_space<vmem>>, vector<1x2x9x16xf32>
    %2 = vector.shape_cast %1 : vector<1x2x9x16xf32> to vector<2x9x16xf32>
    %cst = arith.constant 0.000000e+00 : f32
    %3 = vector.broadcast %cst : f32 to vector<2x1x16xf32>
    %4 = tpu.concatenate %3, %2 in 1 : vector<2x1x16xf32>, vector<2x9x16xf32> -> vector<2x10x16xf32>
    %cst_6 = arith.constant 0.000000e+00 : f32
    %5 = vector.broadcast %cst_6 : f32 to vector<2x10x1xf32>
    %6 = tpu.concatenate %5, %4, %5 in 2 : vector<2x10x1xf32>, vector<2x10x16xf32>, vector<2x10x1xf32> -> vector<2x10x18xf32>
    %7 = vector.extract_strided_slice %6 {offsets = [0, 0, 0], sizes = [2, 10, 16], strides = [1, 1, 1]} : vector<2x10x18xf32> to vector<2x10x16xf32>
    %8 = vector.extract_strided_slice %7 {offsets = [0, 0, 0], sizes = [2, 8, 16], strides = [1, 1, 1]} : vector<2x10x16xf32> to vector<2x8x16xf32>
    %9 = vector.extract_strided_slice %0 {offsets = [0, 0, 0], sizes = [2, 1, 1], strides = [1, 1, 1]} : vector<2x3x3xf32> to vector<2x1x1xf32>
    %10 = vector.broadcast %9 : vector<2x1x1xf32> to vector<2x8x16xf32>
    %11 = arith.mulf %8, %10 : vector<2x8x16xf32>
    %12 = vector.extract_strided_slice %7 {offsets = [0, 1, 0], sizes = [2, 8, 16], strides = [1, 1, 1]} : vector<2x10x16xf32> to vector<2x8x16xf32>
    %13 = vector.extract_strided_slice %0 {offsets = [0, 1, 0], sizes = [2, 1, 1], strides = [1, 1, 1]} : vector<2x3x3xf32> to vector<2x1x1xf32>
    %14 = vector.broadcast %13 : vector<2x1x1xf32> to vector<2x8x16xf32>
    %15 = arith.mulf %12, %14 : vector<2x8x16xf32>
    %16 = arith.addf %11, %15 : vector<2x8x16xf32>
    %17 = vector.extract_strided_slice %7 {offsets = [0, 2, 0], sizes = [2, 8, 16], strides = [1, 1, 1]} : vector<2x10x16xf32> to vector<2x8x16xf32>
    %18 = vector.extract_strided_slice %0 {offsets = [0, 2, 0], sizes = [2, 1, 1], strides = [1, 1, 1]} : vector<2x3x3xf32> to vector<2x1x1xf32>
    %19 = vector.broadcast %18 : vector<2x1x1xf32> to vector<2x8x16xf32>
    %20 = arith.mulf %17, %19 : vector<2x8x16xf32>
    %21 = arith.addf %16, %20 : vector<2x8x16xf32>
    %22 = vector.extract_strided_slice %6 {offsets = [0, 0, 1], sizes = [2, 10, 16], strides = [1, 1, 1]} : vector<2x10x18xf32> to vector<2x10x16xf32>
    %23 = vector.extract_strided_slice %22 {offsets = [0, 0, 0], sizes = [2, 8, 16], strides = [1, 1, 1]} : vector<2x10x16xf32> to vector<2x8x16xf32>
    %24 = vector.extract_strided_slice %0 {offsets = [0, 0, 1], sizes = [2, 1, 1], strides = [1, 1, 1]} : vector<2x3x3xf32> to vector<2x1x1xf32>
    %25 = vector.broadcast %24 : vector<2x1x1xf32> to vector<2x8x16xf32>
    %26 = arith.mulf %23, %25 : vector<2x8x16xf32>
    %27 = arith.addf %21, %26 : vector<2x8x16xf32>
    %28 = vector.extract_strided_slice %22 {offsets = [0, 1, 0], sizes = [2, 8, 16], strides = [1, 1, 1]} : vector<2x10x16xf32> to vector<2x8x16xf32>
    %29 = vector.extract_strided_slice %0 {offsets = [0, 1, 1], sizes = [2, 1, 1], strides = [1, 1, 1]} : vector<2x3x3xf32> to vector<2x1x1xf32>
    %30 = vector.broadcast %29 : vector<2x1x1xf32> to vector<2x8x16xf32>
    %31 = arith.mulf %28, %30 : vector<2x8x16xf32>
    %32 = arith.addf %27, %31 : vector<2x8x16xf32>
    %33 = vector.extract_strided_slice %22 {offsets = [0, 2, 0], sizes = [2, 8, 16], strides = [1, 1, 1]} : vector<2x10x16xf32> to vector<2x8x16xf32>
    %34 = vector.extract_strided_slice %0 {offsets = [0, 2, 1], sizes = [2, 1, 1], strides = [1, 1, 1]} : vector<2x3x3xf32> to vector<2x1x1xf32>
    %35 = vector.broadcast %34 : vector<2x1x1xf32> to vector<2x8x16xf32>
    %36 = arith.mulf %33, %35 : vector<2x8x16xf32>
    %37 = arith.addf %32, %36 : vector<2x8x16xf32>
    %38 = vector.extract_strided_slice %6 {offsets = [0, 0, 2], sizes = [2, 10, 16], strides = [1, 1, 1]} : vector<2x10x18xf32> to vector<2x10x16xf32>
    %39 = vector.extract_strided_slice %38 {offsets = [0, 0, 0], sizes = [2, 8, 16], strides = [1, 1, 1]} : vector<2x10x16xf32> to vector<2x8x16xf32>
    %40 = vector.extract_strided_slice %0 {offsets = [0, 0, 2], sizes = [2, 1, 1], strides = [1, 1, 1]} : vector<2x3x3xf32> to vector<2x1x1xf32>
    %41 = vector.broadcast %40 : vector<2x1x1xf32> to vector<2x8x16xf32>
    %42 = arith.mulf %39, %41 : vector<2x8x16xf32>
    %43 = arith.addf %37, %42 : vector<2x8x16xf32>
    %44 = vector.extract_strided_slice %38 {offsets = [0, 1, 0], sizes = [2, 8, 16], strides = [1, 1, 1]} : vector<2x10x16xf32> to vector<2x8x16xf32>
    %45 = vector.extract_strided_slice %0 {offsets = [0, 1, 2], sizes = [2, 1, 1], strides = [1, 1, 1]} : vector<2x3x3xf32> to vector<2x1x1xf32>
    %46 = vector.broadcast %45 : vector<2x1x1xf32> to vector<2x8x16xf32>
    %47 = arith.mulf %44, %46 : vector<2x8x16xf32>
    %48 = arith.addf %43, %47 : vector<2x8x16xf32>
    %49 = vector.extract_strided_slice %38 {offsets = [0, 2, 0], sizes = [2, 8, 16], strides = [1, 1, 1]} : vector<2x10x16xf32> to vector<2x8x16xf32>
    %50 = vector.extract_strided_slice %0 {offsets = [0, 2, 2], sizes = [2, 1, 1], strides = [1, 1, 1]} : vector<2x3x3xf32> to vector<2x1x1xf32>
    %51 = vector.broadcast %50 : vector<2x1x1xf32> to vector<2x8x16xf32>
    %52 = arith.mulf %49, %51 : vector<2x8x16xf32>
    %53 = arith.addf %48, %52 : vector<2x8x16xf32>
    %c0_7 = arith.constant 0 : index
    %c0_8 = arith.constant 0 : index
    %c0_9 = arith.constant 0 : index
    %c0_10 = arith.constant 0 : index
    %54 = vector.load %arg4[%c0_7, %c0_8, %c0_9, %c0_10] : memref<1x2x16x16xf32, #tpu.memory_space<vmem>>, vector<1x2x8x16xf32>
    %55 = vector.shape_cast %54 : vector<1x2x8x16xf32> to vector<2x8x16xf32>
    %56 = vector.shape_cast %53 : vector<2x8x16xf32> to vector<1x2x8x16xf32>
    tpu.vector_store %arg4[%c0_7, %c0_8, %c0_9, %c0_10], %56 {strides = array<i32>} : memref<1x2x16x16xf32, #tpu.memory_space<vmem>>, vector<1x2x8x16xf32>,
    %c0_11 = arith.constant 0 : index
    %c0_12 = arith.constant 0 : index
    %c7 = arith.constant 7 : index
    %c0_13 = arith.constant 0 : index
    %57 = vector.load %arg2[%c0_11, %c0_12, %c7, %c0_13] : memref<1x2x16x16xf32, #tpu.memory_space<vmem>>, vector<1x2x9x16xf32>
    %58 = vector.shape_cast %57 : vector<1x2x9x16xf32> to vector<2x9x16xf32>
    %cst_14 = arith.constant 0.000000e+00 : f32
    %59 = vector.broadcast %cst_14 : f32 to vector<2x1x16xf32>
    %60 = tpu.concatenate %58, %59 in 1 : vector<2x9x16xf32>, vector<2x1x16xf32> -> vector<2x10x16xf32>
    %cst_15 = arith.constant 0.000000e+00 : f32
    %61 = vector.broadcast %cst_15 : f32 to vector<2x10x1xf32>
    %62 = tpu.concatenate %61, %60, %61 in 2 : vector<2x10x1xf32>, vector<2x10x16xf32>, vector<2x10x1xf32> -> vector<2x10x18xf32>
    %63 = vector.extract_strided_slice %62 {offsets = [0, 0, 0], sizes = [2, 10, 16], strides = [1, 1, 1]} : vector<2x10x18xf32> to vector<2x10x16xf32>
    %64 = vector.extract_strided_slice %63 {offsets = [0, 0, 0], sizes = [2, 8, 16], strides = [1, 1, 1]} : vector<2x10x16xf32> to vector<2x8x16xf32>
    %65 = vector.extract_strided_slice %0 {offsets = [0, 0, 0], sizes = [2, 1, 1], strides = [1, 1, 1]} : vector<2x3x3xf32> to vector<2x1x1xf32>
    %66 = vector.broadcast %65 : vector<2x1x1xf32> to vector<2x8x16xf32>
    %67 = arith.mulf %64, %66 : vector<2x8x16xf32>
    %68 = vector.extract_strided_slice %63 {offsets = [0, 1, 0], sizes = [2, 8, 16], strides = [1, 1, 1]} : vector<2x10x16xf32> to vector<2x8x16xf32>
    %69 = vector.extract_strided_slice %0 {offsets = [0, 1, 0], sizes = [2, 1, 1], strides = [1, 1, 1]} : vector<2x3x3xf32> to vector<2x1x1xf32>
    %70 = vector.broadcast %69 : vector<2x1x1xf32> to vector<2x8x16xf32>
    %71 = arith.mulf %68, %70 : vector<2x8x16xf32>
    %72 = arith.addf %67, %71 : vector<2x8x16xf32>
    %73 = vector.extract_strided_slice %63 {offsets = [0, 2, 0], sizes = [2, 8, 16], strides = [1, 1, 1]} : vector<2x10x16xf32> to vector<2x8x16xf32>
    %74 = vector.extract_strided_slice %0 {offsets = [0, 2, 0], sizes = [2, 1, 1], strides = [1, 1, 1]} : vector<2x3x3xf32> to vector<2x1x1xf32>
    %75 = vector.broadcast %74 : vector<2x1x1xf32> to vector<2x8x16xf32>
    %76 = arith.mulf %73, %75 : vector<2x8x16xf32>
    %77 = arith.addf %72, %76 : vector<2x8x16xf32>
    %78 = vector.extract_strided_slice %62 {offsets = [0, 0, 1], sizes = [2, 10, 16], strides = [1, 1, 1]} : vector<2x10x18xf32> to vector<2x10x16xf32>
    %79 = vector.extract_strided_slice %78 {offsets = [0, 0, 0], sizes = [2, 8, 16], strides = [1, 1, 1]} : vector<2x10x16xf32> to vector<2x8x16xf32>
    %80 = vector.extract_strided_slice %0 {offsets = [0, 0, 1], sizes = [2, 1, 1], strides = [1, 1, 1]} : vector<2x3x3xf32> to vector<2x1x1xf32>
    %81 = vector.broadcast %80 : vector<2x1x1xf32> to vector<2x8x16xf32>
    %82 = arith.mulf %79, %81 : vector<2x8x16xf32>
    %83 = arith.addf %77, %82 : vector<2x8x16xf32>
    %84 = vector.extract_strided_slice %78 {offsets = [0, 1, 0], sizes = [2, 8, 16], strides = [1, 1, 1]} : vector<2x10x16xf32> to vector<2x8x16xf32>
    %85 = vector.extract_strided_slice %0 {offsets = [0, 1, 1], sizes = [2, 1, 1], strides = [1, 1, 1]} : vector<2x3x3xf32> to vector<2x1x1xf32>
    %86 = vector.broadcast %85 : vector<2x1x1xf32> to vector<2x8x16xf32>
    %87 = arith.mulf %84, %86 : vector<2x8x16xf32>
    %88 = arith.addf %83, %87 : vector<2x8x16xf32>
    %89 = vector.extract_strided_slice %78 {offsets = [0, 2, 0], sizes = [2, 8, 16], strides = [1, 1, 1]} : vector<2x10x16xf32> to vector<2x8x16xf32>
    %90 = vector.extract_strided_slice %0 {offsets = [0, 2, 1], sizes = [2, 1, 1], strides = [1, 1, 1]} : vector<2x3x3xf32> to vector<2x1x1xf32>
    %91 = vector.broadcast %90 : vector<2x1x1xf32> to vector<2x8x16xf32>
    %92 = arith.mulf %89, %91 : vector<2x8x16xf32>
    %93 = arith.addf %88, %92 : vector<2x8x16xf32>
    %94 = vector.extract_strided_slice %62 {offsets = [0, 0, 2], sizes = [2, 10, 16], strides = [1, 1, 1]} : vector<2x10x18xf32> to vector<2x10x16xf32>
    %95 = vector.extract_strided_slice %94 {offsets = [0, 0, 0], sizes = [2, 8, 16], strides = [1, 1, 1]} : vector<2x10x16xf32> to vector<2x8x16xf32>
    %96 = vector.extract_strided_slice %0 {offsets = [0, 0, 2], sizes = [2, 1, 1], strides = [1, 1, 1]} : vector<2x3x3xf32> to vector<2x1x1xf32>
    %97 = vector.broadcast %96 : vector<2x1x1xf32> to vector<2x8x16xf32>
    %98 = arith.mulf %95, %97 : vector<2x8x16xf32>
    %99 = arith.addf %93, %98 : vector<2x8x16xf32>
    %100 = vector.extract_strided_slice %94 {offsets = [0, 1, 0], sizes = [2, 8, 16], strides = [1, 1, 1]} : vector<2x10x16xf32> to vector<2x8x16xf32>
    %101 = vector.extract_strided_slice %0 {offsets = [0, 1, 2], sizes = [2, 1, 1], strides = [1, 1, 1]} : vector<2x3x3xf32> to vector<2x1x1xf32>
    %102 = vector.broadcast %101 : vector<2x1x1xf32> to vector<2x8x16xf32>
    %103 = arith.mulf %100, %102 : vector<2x8x16xf32>
    %104 = arith.addf %99, %103 : vector<2x8x16xf32>
    %105 = vector.extract_strided_slice %94 {offsets = [0, 2, 0], sizes = [2, 8, 16], strides = [1, 1, 1]} : vector<2x10x16xf32> to vector<2x8x16xf32>
    %106 = vector.extract_strided_slice %0 {offsets = [0, 2, 2], sizes = [2, 1, 1], strides = [1, 1, 1]} : vector<2x3x3xf32> to vector<2x1x1xf32>
    %107 = vector.broadcast %106 : vector<2x1x1xf32> to vector<2x8x16xf32>
    %108 = arith.mulf %105, %107 : vector<2x8x16xf32>
    %109 = arith.addf %104, %108 : vector<2x8x16xf32>
    %c0_16 = arith.constant 0 : index
    %c0_17 = arith.constant 0 : index
    %c8 = arith.constant 8 : index
    %c0_18 = arith.constant 0 : index
    %110 = vector.load %arg4[%c0_16, %c0_17, %c8, %c0_18] : memref<1x2x16x16xf32, #tpu.memory_space<vmem>>, vector<1x2x8x16xf32>
    %111 = vector.shape_cast %110 : vector<1x2x8x16xf32> to vector<2x8x16xf32>
    %112 = vector.shape_cast %109 : vector<2x8x16xf32> to vector<1x2x8x16xf32>
    tpu.vector_store %arg4[%c0_16, %c0_17, %c8, %c0_18], %112 {strides = array<i32>} : memref<1x2x16x16xf32, #tpu.memory_space<vmem>>, vector<1x2x8x16xf32>,
    return
  }
  func.func @transform_0(%arg0: i32, %arg1: i32) -> (i32, i32, i32, i32) {
    %c0_i32 = arith.constant 0 : i32
    %c0_i32_0 = arith.constant 0 : i32
    %c0_i32_1 = arith.constant 0 : i32
    return %arg1, %arg0, %c0_i32, %c0_i32_0 : i32, i32, i32, i32
  }
  func.func @transform_1(%arg0: i32, %arg1: i32) -> (i32, i32, i32) {
    %c0_i32 = arith.constant 0 : i32
    %c0_i32_0 = arith.constant 0 : i32
    %c0_i32_1 = arith.constant 0 : i32
    return %arg0, %c0_i32, %c0_i32_0 : i32, i32, i32
  }
  func.func @transform_2(%arg0: i32, %arg1: i32) -> (i32, i32, i32, i32) {
    %c0_i32 = arith.constant 0 : i32
    %c0_i32_0 = arith.constant 0 : i32
    %c0_i32_1 = arith.constant 0 : i32
    return %arg1, %arg0, %c0_i32, %c0_i32_0 : i32, i32, i32, i32
  }
}

</mosaic_0001>

<llo_original>
// kernel: tpu_custom_call.1
$region0: #{tpu_custom_call.1}
  #allocation0 [shape = 'u32[]', space=smem, size = 0x4, offset = 0x4, fixed_abs, tag = 'smem constant byte address 0x4 - core index']
  #allocation1 [shape = 'u32[144,128]{1,0:T(1,128)}', space=vmem, size = 0x12000, scoped, tag = 'internal scratch']
  %s0 = inlined_call_operand.hbm [shape: f32[2,4,16,16], index: 0, kind: input, shape index: {}]
  %s1 = inlined_call_operand.vmem [shape: f32[4,3,3], index: 1, kind: input, shape index: {}]
  %s2 = inlined_call_operand.hbm [shape: f32[2,4,16,16], index: 2, kind: output, shape index: {}]
  %s3 = sld [smem:[#allocation0]]
  $region45: #{tpu_custom_call.1} parent=0
    _
  %s5 = ssub.s32 1, %s3
  %s6 = scalar_select 0, %s5, %s3
  $region1: #{tpu_custom_call.1} parent=0
    #allocation2 [shape = 'u8[32768]{0}', space=vmem, size = 0x8000, scoped, tag = 'input window, operand 0']
    #allocation3 [shape = 's32[2]{0}', space=sflag, size = 0x8, scoped, tag = 'scoped memory for tpu_custom_call.1']
    #allocation4 [shape = 's32[2]{0}', space=sflag, size = 0x8, scoped, tag = 'scoped memory for tpu_custom_call.1']
    #allocation5 [shape = 'u8[32768]{0}', space=vmem, size = 0x8000, scoped, tag = 'output window, operand 0']
    %7 = vsyncpa [#allocation3], 0
    %s8 = scalar_lea.sflag [#allocation3], 1
    %9 = vsyncpa %s8, 0
    %10 = vsyncpa [#allocation4], 0
    %s11 = scalar_lea.sflag [#allocation4], 1
    %12 = vsyncpa %s11, 0
    loop: start=0, step=1, limit=6
    $region2: #{tpu_custom_call.1} parent=1 // loop_pre_header
      _
    $region3: #{tpu_custom_call.1} parent=1 // loop_header
      %s14 = sphi 0, %s18
      %p15 = scmp.ge.s32.totalorder %s14, 6
      %s21 = sphi 0, %s33
      %s22 = sphi 0, %s29
      %s23 = sphi 0, %s21
      %s24 = sphi 0, %s22
      %s25 = sphi 0, %s23
      %s26 = sphi 0, %s24
      %s38 = sphi 0, %s40
      %s41 = sphi 0, %s38
      %s42 = sphi 0, %s41
      %s58 = sphi 0, %s42
      %s64 = sphi 0, %s66
      %s67 = sphi 0, %s64
      %s68 = sphi 0, %s67
      %s84 = sphi 0, %s68
      %s92 = sphi 0, %s94
      %s95 = sphi 0, %s92
      %s96 = sphi 0, %s95
      %s112 = sphi 0, %s96
    $region4: #{tpu_custom_call.1} parent=1 // loop_header_branch
      %17 = sbr.rel (%p15) target = $region8
    $region5: #{tpu_custom_call.1} parent=1 // loop_body
      %s19 = ssub.s32 %s14, 1
      %s20 = ssub.s32 %s14, 2
      %s27 = sadd.s32 1, %s22
      %p28 = scmp.ge.s32.totalorder %s27, 2
      %s29 = scalar_select %p28, 0, %s27
      %s30 = sadd.s32 1, %s21
      %s31 = scalar_select %p28, %s30, %s21
      %p32 = scmp.ge.s32.totalorder %s31, 2
      %s33 = scalar_select %p32, 0, %s31
      %s34 = ssub.s32 %s22, %s29
      %s35 = ssub.s32 %s21, %s33
      %s36 = sor.u32 %s34, %s35
      %p37 = scmp.eq.s32.totalorder %s36, 0
      %s39 = sadd.s32 %s38, 1
      %s40 = scalar_select %p37, %s38, %s39
      %p43 = pneg %p37
      %p44 = scmp.eq.s32.totalorder %s14, 3
      %p45 = por %p43, %p44
      %p46 = scmp.ne.s32.totalorder %s38, %s41
      %p47 = scmp.eq.s32.totalorder %s14, 0
      %p48 = por %p46, %p47
      %p49 = scmp.ne.s32.totalorder %s38, %s41
      %p50 = scmp.eq.s32.totalorder %s19, 3
      %p51 = por %p49, %p50
      %p52 = scmp.ne.s32.totalorder %s41, %s42
      %p53 = scmp.eq.s32.totalorder %s19, 0
      %p54 = por %p52, %p53
      %p55 = scmp.ne.s32.totalorder %s41, %s42
      %p56 = scmp.eq.s32.totalorder %s20, 3
      %p57 = por %p55, %p56
      %p59 = scmp.ne.s32.totalorder %s42, %s58
      %p60 = scmp.eq.s32.totalorder %s20, 0
      %p61 = por %p59, %p60
      %s62 = ssub.s32 %s21, %s33
      %p63 = scmp.eq.s32.totalorder %s62, 0
      %s65 = sadd.s32 %s64, 1
      %s66 = scalar_select %p63, %s64, %s65
      %p69 = pneg %p63
      %p70 = scmp.eq.s32.totalorder %s14, 3
      %p71 = por %p69, %p70
      %p72 = scmp.ne.s32.totalorder %s64, %s67
      %p73 = scmp.eq.s32.totalorder %s14, 0
      %p74 = por %p72, %p73
      %p75 = scmp.ne.s32.totalorder %s64, %s67
      %p76 = scmp.eq.s32.totalorder %s19, 3
      %p77 = por %p75, %p76
      %p78 = scmp.ne.s32.totalorder %s67, %s68
      %p79 = scmp.eq.s32.totalorder %s19, 0
      %p80 = por %p78, %p79
      %p81 = scmp.ne.s32.totalorder %s67, %s68
      %p82 = scmp.eq.s32.totalorder %s20, 3
      %p83 = por %p81, %p82
      %p85 = scmp.ne.s32.totalorder %s68, %s84
      %p86 = scmp.eq.s32.totalorder %s20, 0
      %p87 = por %p85, %p86
      %s88 = ssub.s32 %s22, %s29
      %s89 = ssub.s32 %s21, %s33
      %s90 = sor.u32 %s88, %s89
      %p91 = scmp.eq.s32.totalorder %s90, 0
      %s93 = sadd.s32 %s92, 1
      %s94 = scalar_select %p91, %s92, %s93
      %p97 = pneg %p91
      %p98 = scmp.eq.s32.totalorder %s14, 3
      %p99 = por %p97, %p98
      %p100 = scmp.ne.s32.totalorder %s92, %s95
      %p101 = scmp.eq.s32.totalorder %s14, 0
      %p102 = por %p100, %p101
      %p103 = scmp.ne.s32.totalorder %s92, %s95
      %p104 = scmp.eq.s32.totalorder %s19, 3
      %p105 = por %p103, %p104
      %p106 = scmp.ne.s32.totalorder %s95, %s96
      %p107 = scmp.eq.s32.totalorder %s19, 0
      %p108 = por %p106, %p107
      %p109 = scmp.ne.s32.totalorder %s95, %s96
      %p110 = scmp.eq.s32.totalorder %s20, 3
      %p111 = por %p109, %p110
      %p113 = scmp.ne.s32.totalorder %s96, %s112
      %p114 = scmp.eq.s32.totalorder %s20, 0
      %p115 = por %p113, %p114
      %p116 = scmp.le.s32.totalorder 1, %s14
      %p117 = scmp.lt.s32.totalorder %s14, 5
      %p118 = pnand %p116, %p117
      %p119 = pneg %p118
      // Predicated region
      $region9: #{tpu_custom_call.1} parent=5 // pred_check
        _
      $region10: #{tpu_custom_call.1} parent=5 // pred_check_branch
        %121 = sbr.rel (%p118) target = $region12
      $region11: #{tpu_custom_call.1} parent=5 // pred_region
        %s122 = ssub.s32 %s14, 1
      $region12: #{tpu_custom_call.1} parent=5 // pred_fallthru
        _
      %p123 = scmp.lt.s32.totalorder %s14, 4
      // Predicated region
      $region13: #{tpu_custom_call.1} parent=5 // pred_check
        %p124 = pneg %p123
      $region14: #{tpu_custom_call.1} parent=5 // pred_check_branch
        %126 = sbr.rel (%p124) target = $region16
      $region15: #{tpu_custom_call.1} parent=5 // pred_region
        // Predicated region
        $region17: #{tpu_custom_call.1} parent=15 // pred_check
          %p127 = pneg %p48
        $region18: #{tpu_custom_call.1} parent=15 // pred_check_branch
          %129 = sbr.rel (%p127) target = $region20
        $region19: #{tpu_custom_call.1} parent=15 // pred_region
          %s130 = sand.u32 %s38, 1
          %s131 = scalar_lea.sflag [#allocation3], %s130
          %s132 = sand.u32 %s38, 1
          %s133 = smul.addr %s132, 32
          %s134 = scalar_lea.vmem [#allocation2], %s133
          %s135 = smul.u32 2, %s21
          %s137 = ssub.s32 512, 512
          %138 = vsyncadd %s131, %s137
          %s139 = smul.addr %s135, 2
          %s140 = smul.addr %s22, 8
          %s141 = sadd.s32 %s139, %s140
          %s142 = smul.addr %s141, 128
          %s143 = scalar_lea.hbm %s0, %s142
          %s144 = sshll.u32 %s134, 4
          %s145 = int_to_ptr.vmem [resolvable:$true] %s144
          %150 = dma.hbm_to_vmem [thread:$0]  %s143, 512, %s145, %s131, 128, 128, 8
        $region20: #{tpu_custom_call.1} parent=15 // pred_fallthru
          _
        // Predicated region
        $region21: #{tpu_custom_call.1} parent=15 // pred_check
          %p151 = pneg %p74
        $region22: #{tpu_custom_call.1} parent=15 // pred_check_branch
          %153 = sbr.rel (%p151) target = $region24
        $region23: #{tpu_custom_call.1} parent=15 // pred_region
          %s154 = smul.u32 2, %s21
          %p155 = scmp.lt.s32.totalorder %s154, 3
          %s156 = scalar_select %p155, %s154, 3
          %s157 = smul.addr %s156, 4
          %s158 = scalar_lea.vmem %s1, %s157
          %s159 = smul.u32 2, %s21
        $region24: #{tpu_custom_call.1} parent=15 // pred_fallthru
          _
      $region16: #{tpu_custom_call.1} parent=5 // pred_fallthru
        _
      %p160 = scmp.le.s32.totalorder 1, %s14
      %p161 = scmp.lt.s32.totalorder %s14, 5
      %p162 = pnand %p160, %p161
      %p163 = pneg %p162
      // Predicated region
      $region25: #{tpu_custom_call.1} parent=5 // pred_check
        _
      $region26: #{tpu_custom_call.1} parent=5 // pred_check_branch
        %165 = sbr.rel (%p162) target = $region28
      $region27: #{tpu_custom_call.1} parent=5 // pred_region
        %s166 = ssub.s32 %s14, 1
        %s167 = sand.u32 %s41, 1
        %s168 = scalar_lea.sflag [#allocation3], %s167
        %s169 = sand.u32 %s41, 1
        %s170 = smul.addr %s169, 32
        %s171 = scalar_lea.vmem [#allocation2], %s170
        // Predicated region
        $region29: #{tpu_custom_call.1} parent=27 // pred_check
          %p172 = pneg %p54
        $region30: #{tpu_custom_call.1} parent=27 // pred_check_branch
          %174 = sbr.rel (%p172) target = $region32
        $region31: #{tpu_custom_call.1} parent=27 // pred_region
          %175 = dma.done %s168, 512
        $region32: #{tpu_custom_call.1} parent=27 // pred_fallthru
          _
        %s176 = sand.u32 %s41, 1
        %s177 = scalar_lea.sflag [#allocation3], %s176
        %s178 = sand.u32 %s41, 1
        %s179 = smul.addr %s178, 32
        %s180 = scalar_lea.vmem [#allocation2], %s179
        %p181 = pneg %p54
        %p182 = pneg %p51
        %s183 = smul.u32 2, %s23
        %p184 = scmp.lt.s32.totalorder %s183, 3
        %s185 = scalar_select %p184, %s183, 3
        %s186 = smul.addr %s185, 4
        %s187 = scalar_lea.vmem %s1, %s186
        %p188 = pneg %p80
        %p189 = pneg %p77
        %p190 = pneg %p108
        %p191 = pneg %p105
        %s192 = sand.u32 %s95, 1
        %s193 = scalar_lea.sflag [#allocation4], %s192
        %s194 = sand.u32 %s95, 1
        %s195 = smul.addr %s194, 32
        %s196 = scalar_lea.vmem [#allocation5], %s195
        %s197 = smul.u32 2, %s23
        %s198 = smul.u32 2, %s23
        %p199 = scmp.lt.s32.totalorder %s198, 3
        %s200 = scalar_select %p199, %s198, 3
        %s201 = smul.addr %s200, 4
        %s202 = scalar_lea.vmem %s1, %s201
        %s203 = smul.u32 2, %s23
        %s204 = smul.u32 2, %s23
        %v205 = vld [vmem:[%s202] sm:$0x7]
        %v206 = vld [vmem:[%s202 + $0x4] sm:$0x7]
        %v207 = vld [vmem:[%s171] sm:$0xff]
        %v208 = vld [vmem:[%s171 + $0x8] sm:$0x1]
        %v209 = vld [vmem:[%s171 + $0x10] sm:$0xff]
        %v210 = vld [vmem:[%s171 + $0x18] sm:$0x1]
        %vm215 = vcmask 1040384
        %v216 = vrot.slane %v207, 7
        %v217 = vrot.slane %v208, 7
        %v218 = vsel %vm215, %v216, %v217
        %v219 = vrot.slane %v209, 7
        %v220 = vrot.slane %v210, 7
        %v221 = vsel %vm215, %v219, %v220
        %v224 = vsel %vm215, 0.0, %v216
        %v225 = vsel %vm215, 0.0, %v219
        %228 = vrot.lane.b32.xlu0 %v224, 1
        %v229 = vpop.permute.xlu0 %228
        %230 = vrot.lane.b32.xlu0 %v218, 1
        %v231 = vpop.permute.xlu0 %230
        %232 = vrot.lane.b32.xlu0 %v225, 1
        %v233 = vpop.permute.xlu0 %232
        %234 = vrot.lane.b32.xlu0 %v221, 1
        %v235 = vpop.permute.xlu0 %234
        %vm240 = vcmask 7168
        %v241 = vsel %vm240, 0.0, %v229
        %v242 = vsel %vm240, 0.0, %v231
        %v243 = vsel %vm240, 0.0, %v233
        %v244 = vsel %vm240, 0.0, %v235
        %vm245 = vcmask 138240
        %v246 = vsel %vm245, %v241, 0.0
        %v247 = vsel %vm245, %v242, 0.0
        %v248 = vsel %vm245, %v243, 0.0
        %v249 = vsel %vm245, %v244, 0.0
        %s251 = vtos %v205
        %v252 = vstv %s251
        %s255 = vtos %v206
        %v256 = vstv %s255
        %v258 = vmul.f32 %v246, %v252
        %v259 = vmul.f32 %v248, %v256
        %v260 = vrot.slane %v205, 1
        %v261 = vrot.slane %v206, 1
        %s262 = vtos %v260
        %v263 = vstv %s262
        %s265 = vtos %v261
        %v266 = vstv %s265
        %v268 = vmul.f32 %v246, %v263
        %v269 = vmul.f32 %v247, %v263
        %v270 = vmul.f32 %v248, %v266
        %v271 = vmul.f32 %v249, %v266
        %vm276 = vcmask 1046528
        %v277 = vrot.slane %v268, 1
        %v278 = vrot.slane %v269, 1
        %v279 = vsel %vm276, %v277, %v278
        %v280 = vrot.slane %v270, 1
        %v281 = vrot.slane %v271, 1
        %v282 = vsel %vm276, %v280, %v281
        %v285 = vadd.f32 %v258, %v279
        %v286 = vadd.f32 %v259, %v282
        %v287 = vrot.slane %v205, 2
        %v288 = vrot.slane %v206, 2
        %s289 = vtos %v287
        %v290 = vstv %s289
        %s292 = vtos %v288
        %v293 = vstv %s292
        %v295 = vmul.f32 %v246, %v290
        %v296 = vmul.f32 %v247, %v290
        %v297 = vmul.f32 %v248, %v293
        %v298 = vmul.f32 %v249, %v293
        %vm303 = vcmask 1045504
        %v304 = vrot.slane %v295, 2
        %v305 = vrot.slane %v296, 2
        %v306 = vsel %vm303, %v304, %v305
        %v307 = vrot.slane %v297, 2
        %v308 = vrot.slane %v298, 2
        %v309 = vsel %vm303, %v307, %v308
        %v312 = vadd.f32 %v285, %v306
        %v313 = vadd.f32 %v286, %v309
        %314 = vrot.lane.b32.xlu0 %v205, 127
        %v315 = vpop.permute.xlu0 %314
        %316 = vrot.lane.b32.xlu0 %v206, 127
        %v317 = vpop.permute.xlu0 %316
        %s318 = vtos %v315
        %v319 = vstv %s318
        %s321 = vtos %v317
        %v322 = vstv %s321
        %v324 = vmul.f32 %v246, %v319
        %v325 = vmul.f32 %v248, %v322
        %328 = vrot.lane.b32.xlu0 %v324, 127
        %v329 = vpop.permute.xlu0 %328
        %330 = vrot.lane.b32.xlu0 %v325, 127
        %v331 = vpop.permute.xlu0 %330
        %v334 = vadd.f32 %v312, %v329
        %v335 = vadd.f32 %v313, %v331
        %336 = vrot.lane.b32.xlu0 %v260, 127
        %v337 = vpop.permute.xlu0 %336
        %338 = vrot.lane.b32.xlu0 %v261, 127
        %v339 = vpop.permute.xlu0 %338
        %s340 = vtos %v337
        %v341 = vstv %s340
        %s343 = vtos %v339
        %v344 = vstv %s343
        %v346 = vmul.f32 %v246, %v341
        %v347 = vmul.f32 %v247, %v341
        %v348 = vmul.f32 %v248, %v344
        %v349 = vmul.f32 %v249, %v344
        %v354 = vrot.slane %v346, 1
        %v355 = vrot.slane %v347, 1
        %v356 = vsel %vm276, %v354, %v355
        %v357 = vrot.slane %v348, 1
        %v358 = vrot.slane %v349, 1
        %v359 = vsel %vm276, %v357, %v358
        %360 = vrot.lane.b32.xlu0 %v356, 127
        %v361 = vpop.permute.xlu0 %360
        %362 = vrot.lane.b32.xlu0 %v359, 127
        %v363 = vpop.permute.xlu0 %362
        %v366 = vadd.f32 %v334, %v361
        %v367 = vadd.f32 %v335, %v363
        %368 = vrot.lane.b32.xlu0 %v287, 127
        %v369 = vpop.permute.xlu0 %368
        %370 = vrot.lane.b32.xlu0 %v288, 127
        %v371 = vpop.permute.xlu0 %370
        %s372 = vtos %v369
        %v373 = vstv %s372
        %s375 = vtos %v371
        %v376 = vstv %s375
        %v378 = vmul.f32 %v246, %v373
        %v379 = vmul.f32 %v247, %v373
        %v380 = vmul.f32 %v248, %v376
        %v381 = vmul.f32 %v249, %v376
        %v386 = vrot.slane %v378, 2
        %v387 = vrot.slane %v379, 2
        %v388 = vsel %vm303, %v386, %v387
        %v389 = vrot.slane %v380, 2
        %v390 = vrot.slane %v381, 2
        %v391 = vsel %vm303, %v389, %v390
        %392 = vrot.lane.b32.xlu0 %v388, 127
        %v393 = vpop.permute.xlu0 %392
        %394 = vrot.lane.b32.xlu0 %v391, 127
        %v395 = vpop.permute.xlu0 %394
        %v398 = vadd.f32 %v366, %v393
        %v399 = vadd.f32 %v367, %v395
        %400 = vrot.lane.b32.xlu0 %v205, 126
        %v401 = vpop.permute.xlu0 %400
        %402 = vrot.lane.b32.xlu0 %v206, 126
        %v403 = vpop.permute.xlu0 %402
        %s404 = vtos %v401
        %v405 = vstv %s404
        %s407 = vtos %v403
        %v408 = vstv %s407
        %v410 = vmul.f32 %v246, %v405
        %v411 = vmul.f32 %v248, %v408
        %414 = vrot.lane.b32.xlu0 %v410, 126
        %v415 = vpop.permute.xlu0 %414
        %416 = vrot.lane.b32.xlu0 %v411, 126
        %v417 = vpop.permute.xlu0 %416
        %v420 = vadd.f32 %v398, %v415
        %v421 = vadd.f32 %v399, %v417
        %422 = vrot.lane.b32.xlu0 %v260, 126
        %v423 = vpop.permute.xlu0 %422
        %424 = vrot.lane.b32.xlu0 %v261, 126
        %v425 = vpop.permute.xlu0 %424
        %s426 = vtos %v423
        %v427 = vstv %s426
        %s429 = vtos %v425
        %v430 = vstv %s429
        %v432 = vmul.f32 %v246, %v427
        %v433 = vmul.f32 %v247, %v427
        %v434 = vmul.f32 %v248, %v430
        %v435 = vmul.f32 %v249, %v430
        %v440 = vrot.slane %v432, 1
        %v441 = vrot.slane %v433, 1
        %v442 = vsel %vm276, %v440, %v441
        %v443 = vrot.slane %v434, 1
        %v444 = vrot.slane %v435, 1
        %v445 = vsel %vm276, %v443, %v444
        %446 = vrot.lane.b32.xlu0 %v442, 126
        %v447 = vpop.permute.xlu0 %446
        %448 = vrot.lane.b32.xlu0 %v445, 126
        %v449 = vpop.permute.xlu0 %448
        %v452 = vadd.f32 %v420, %v447
        %v453 = vadd.f32 %v421, %v449
        %454 = vrot.lane.b32.xlu0 %v287, 126
        %v455 = vpop.permute.xlu0 %454
        %456 = vrot.lane.b32.xlu0 %v288, 126
        %v457 = vpop.permute.xlu0 %456
        %s458 = vtos %v455
        %v459 = vstv %s458
        %s461 = vtos %v457
        %v462 = vstv %s461
        %v464 = vmul.f32 %v246, %v459
        %v465 = vmul.f32 %v247, %v459
        %v466 = vmul.f32 %v248, %v462
        %v467 = vmul.f32 %v249, %v462
        %v472 = vrot.slane %v464, 2
        %v473 = vrot.slane %v465, 2
        %v474 = vsel %vm303, %v472, %v473
        %v475 = vrot.slane %v466, 2
        %v476 = vrot.slane %v467, 2
        %v477 = vsel %vm303, %v475, %v476
        %478 = vrot.lane.b32.xlu0 %v474, 126
        %v479 = vpop.permute.xlu0 %478
        %480 = vrot.lane.b32.xlu0 %v477, 126
        %v481 = vpop.permute.xlu0 %480
        %v484 = vadd.f32 %v452, %v479
        %v485 = vadd.f32 %v453, %v481
        %vm486 = vcmask 130048
        %487 = vst.msk [vmem:[%s196] sm:$0xff] %vm486, %v484
        %488 = vst.msk [vmem:[%s196 + $0x10] sm:$0xff] %vm486, %v485
        %v489 = vld [vmem:[%s171 + $0x7] sm:$0xff]
        %v490 = vld [vmem:[%s171 + $0xf] sm:$0x1]
        %v491 = vld [vmem:[%s171 + $0x17] sm:$0xff]
        %v492 = vld [vmem:[%s171 + $0x1f] sm:$0x1]
        %v493 = vsel %vm215, %v490, 0.0
        %v494 = vsel %vm215, %v492, 0.0
        %499 = vrot.lane.b32.xlu0 %v489, 1
        %v500 = vpop.permute.xlu0 %499
        %501 = vrot.lane.b32.xlu0 %v493, 1
        %v502 = vpop.permute.xlu0 %501
        %503 = vrot.lane.b32.xlu0 %v491, 1
        %v504 = vpop.permute.xlu0 %503
        %505 = vrot.lane.b32.xlu0 %v494, 1
        %v506 = vpop.permute.xlu0 %505
        %v511 = vsel %vm240, 0.0, %v500
        %v512 = vsel %vm240, 0.0, %v502
        %v513 = vsel %vm240, 0.0, %v504
        %v514 = vsel %vm240, 0.0, %v506
        %v515 = vsel %vm245, %v511, 0.0
        %v516 = vsel %vm245, %v512, 0.0
        %v517 = vsel %vm245, %v513, 0.0
        %v518 = vsel %vm245, %v514, 0.0
        %v519 = vmul.f32 %v515, %v252
        %v520 = vmul.f32 %v517, %v256
        %v521 = vmul.f32 %v515, %v263
        %v522 = vmul.f32 %v516, %v263
        %v523 = vmul.f32 %v517, %v266
        %v524 = vmul.f32 %v518, %v266
        %v529 = vrot.slane %v521, 1
        %v530 = vrot.slane %v522, 1
        %v531 = vsel %vm276, %v529, %v530
        %v532 = vrot.slane %v523, 1
        %v533 = vrot.slane %v524, 1
        %v534 = vsel %vm276, %v532, %v533
        %v537 = vadd.f32 %v519, %v531
        %v538 = vadd.f32 %v520, %v534
        %v539 = vmul.f32 %v515, %v290
        %v540 = vmul.f32 %v516, %v290
        %v541 = vmul.f32 %v517, %v293
        %v542 = vmul.f32 %v518, %v293
        %v547 = vrot.slane %v539, 2
        %v548 = vrot.slane %v540, 2
        %v549 = vsel %vm303, %v547, %v548
        %v550 = vrot.slane %v541, 2
        %v551 = vrot.slane %v542, 2
        %v552 = vsel %vm303, %v550, %v551
        %v555 = vadd.f32 %v537, %v549
        %v556 = vadd.f32 %v538, %v552
        %v557 = vmul.f32 %v515, %v319
        %v558 = vmul.f32 %v517, %v322
        %561 = vrot.lane.b32.xlu0 %v557, 127
        %v562 = vpop.permute.xlu0 %561
        %563 = vrot.lane.b32.xlu0 %v558, 127
        %v564 = vpop.permute.xlu0 %563
        %v567 = vadd.f32 %v555, %v562
        %v568 = vadd.f32 %v556, %v564
        %v569 = vmul.f32 %v515, %v341
        %v570 = vmul.f32 %v516, %v341
        %v571 = vmul.f32 %v517, %v344
        %v572 = vmul.f32 %v518, %v344
        %v577 = vrot.slane %v569, 1
        %v578 = vrot.slane %v570, 1
        %v579 = vsel %vm276, %v577, %v578
        %v580 = vrot.slane %v571, 1
        %v581 = vrot.slane %v572, 1
        %v582 = vsel %vm276, %v580, %v581
        %583 = vrot.lane.b32.xlu0 %v579, 127
        %v584 = vpop.permute.xlu0 %583
        %585 = vrot.lane.b32.xlu0 %v582, 127
        %v586 = vpop.permute.xlu0 %585
        %v589 = vadd.f32 %v567, %v584
        %v590 = vadd.f32 %v568, %v586
        %v591 = vmul.f32 %v515, %v373
        %v592 = vmul.f32 %v516, %v373
        %v593 = vmul.f32 %v517, %v376
        %v594 = vmul.f32 %v518, %v376
        %v599 = vrot.slane %v591, 2
        %v600 = vrot.slane %v592, 2
        %v601 = vsel %vm303, %v599, %v600
        %v602 = vrot.slane %v593, 2
        %v603 = vrot.slane %v594, 2
        %v604 = vsel %vm303, %v602, %v603
        %605 = vrot.lane.b32.xlu0 %v601, 127
        %v606 = vpop.permute.xlu0 %605
        %607 = vrot.lane.b32.xlu0 %v604, 127
        %v608 = vpop.permute.xlu0 %607
        %v611 = vadd.f32 %v589, %v606
        %v612 = vadd.f32 %v590, %v608
        %v613 = vmul.f32 %v515, %v405
        %v614 = vmul.f32 %v517, %v408
        %617 = vrot.lane.b32.xlu0 %v613, 126
        %v618 = vpop.permute.xlu0 %617
        %619 = vrot.lane.b32.xlu0 %v614, 126
        %v620 = vpop.permute.xlu0 %619
        %v623 = vadd.f32 %v611, %v618
        %v624 = vadd.f32 %v612, %v620
        %v625 = vmul.f32 %v515, %v427
        %v626 = vmul.f32 %v516, %v427
        %v627 = vmul.f32 %v517, %v430
        %v628 = vmul.f32 %v518, %v430
        %v633 = vrot.slane %v625, 1
        %v634 = vrot.slane %v626, 1
        %v635 = vsel %vm276, %v633, %v634
        %v636 = vrot.slane %v627, 1
        %v637 = vrot.slane %v628, 1
        %v638 = vsel %vm276, %v636, %v637
        %639 = vrot.lane.b32.xlu0 %v635, 126
        %v640 = vpop.permute.xlu0 %639
        %641 = vrot.lane.b32.xlu0 %v638, 126
        %v642 = vpop.permute.xlu0 %641
        %v645 = vadd.f32 %v623, %v640
        %v646 = vadd.f32 %v624, %v642
        %v647 = vmul.f32 %v515, %v459
        %v648 = vmul.f32 %v516, %v459
        %v649 = vmul.f32 %v517, %v462
        %v650 = vmul.f32 %v518, %v462
        %v655 = vrot.slane %v647, 2
        %v656 = vrot.slane %v648, 2
        %v657 = vsel %vm303, %v655, %v656
        %v658 = vrot.slane %v649, 2
        %v659 = vrot.slane %v650, 2
        %v660 = vsel %vm303, %v658, %v659
        %661 = vrot.lane.b32.xlu0 %v657, 126
        %v662 = vpop.permute.xlu0 %661
        %663 = vrot.lane.b32.xlu0 %v660, 126
        %v664 = vpop.permute.xlu0 %663
        %v667 = vadd.f32 %v645, %v662
        %v668 = vadd.f32 %v646, %v664
        %669 = vst.msk [vmem:[%s196 + $0x8] sm:$0xff] %vm486, %v667
        %670 = vst.msk [vmem:[%s196 + $0x18] sm:$0xff] %vm486, %v668
        %s671 = sand.u32 %s95, 1
        %s672 = scalar_lea.sflag [#allocation4], %s671
        %s673 = sand.u32 %s95, 1
        %s674 = smul.addr %s673, 32
        %s675 = scalar_lea.vmem [#allocation5], %s674
        // Predicated region
        $region33: #{tpu_custom_call.1} parent=27 // pred_check
          %p676 = pneg %p105
        $region34: #{tpu_custom_call.1} parent=27 // pred_check_branch
          %678 = sbr.rel (%p676) target = $region36
        $region35: #{tpu_custom_call.1} parent=27 // pred_region
          %s679 = smul.u32 2, %s23
          %s681 = ssub.s32 512, 512
          %682 = vsyncadd %s672, %s681
          %s683 = smul.addr %s679, 2
          %s684 = smul.addr %s24, 8
          %s685 = sadd.s32 %s683, %s684
          %s686 = smul.addr %s685, 128
          %s687 = scalar_lea.hbm %s2, %s686
          %s688 = sshll.u32 %s675, 4
          %s689 = int_to_ptr.vmem [resolvable:$true] %s688
          %694 = dma.vmem_to_hbm [thread:$0]  %s689, 512, %s687, %s672, 128, 128, 8
        $region36: #{tpu_custom_call.1} parent=27 // pred_fallthru
          _
      $region28: #{tpu_custom_call.1} parent=5 // pred_fallthru
        _
      %p695 = scmp.le.s32.totalorder 2, %s14
      // Predicated region
      $region37: #{tpu_custom_call.1} parent=5 // pred_check
        %p696 = pneg %p695
      $region38: #{tpu_custom_call.1} parent=5 // pred_check_branch
        %698 = sbr.rel (%p696) target = $region40
      $region39: #{tpu_custom_call.1} parent=5 // pred_region
        %s699 = ssub.s32 %s14, 2
        // Predicated region
        $region41: #{tpu_custom_call.1} parent=39 // pred_check
          %p700 = pneg %p111
        $region42: #{tpu_custom_call.1} parent=39 // pred_check_branch
          %702 = sbr.rel (%p700) target = $region44
        $region43: #{tpu_custom_call.1} parent=39 // pred_region
          %s703 = sand.u32 %s96, 1
          %s704 = scalar_lea.sflag [#allocation4], %s703
          %s705 = sand.u32 %s96, 1
          %s706 = smul.addr %s705, 32
          %s707 = scalar_lea.vmem [#allocation5], %s706
          %708 = dma.done %s704, 512
        $region44: #{tpu_custom_call.1} parent=39 // pred_fallthru
          _
      $region40: #{tpu_custom_call.1} parent=5 // pred_fallthru
        _
    $region6: #{tpu_custom_call.1} parent=1 // loop_footer
      %s18 = sadd.s32 1, %s14
    $region7: #{tpu_custom_call.1} parent=1 // loop_footer_branch
      %13 = sbr.rel target = $region3
    $region8: #{tpu_custom_call.1} parent=1 // loop_exit
      _
    %709 = vsyncpa [#allocation3], 1
    %s710 = scalar_lea.sflag [#allocation3], 1
    %711 = vsyncpa %s710, 1
    %712 = vsyncpa [#allocation4], 1
    %s713 = scalar_lea.sflag [#allocation4], 1
    %714 = vsyncpa %s713, 1

</llo_original>
